<compile_context>
chip_gen: v5e
topology: v5e:2x2
jax: 0.10.0
libtpu: 0.0.40
codegen_flags: <defaults>
</compile_context>

<pallas_src>
from functools import partial

import numpy as np
import jax
import jax.numpy as jnp
from jax.experimental import pallas as pl
from jax.experimental.pallas import tpu as pltpu

HIDDEN = 32            # synthetic denoiser hidden width
MAX_ROW_TILE = 2048    # rows-per-block ceiling (lane-dense, rows on the lane axis)


def _choose_row_tile(m, max_tile=MAX_ROW_TILE):
    """Largest 128-multiple tile <= max_tile that covers m rows."""
    m128 = ((m + 127) // 128) * 128
    return min(max_tile, m128)


# ----------------------------------------------------------------------------
# Fused Pallas kernel: runs ALL DDIM reverse steps for one tile of rows.
#   grid = (row_tiles, S); step axis is innermost ("arbitrary"),
#   x_t state lives in the resident output block across the step axis.
# ----------------------------------------------------------------------------
def ddim_fused_kernel(coef_ref, x0_ref, cond_ref, noise_ref, bias_ref,
                      wxT_ref, wcT_ref, woutT_ref, out_ref, hc_ref):
    s = pl.program_id(1)                      # DDIM step index (0 = first reverse step)

    # First step of this row tile: load the initial state into the resident output
    # block and cache the step-invariant condition projection.
    @pl.when(s == 0)
    def _():
        out_ref[...] = x0_ref[...]
        hc_ref[...] = jnp.dot(wcT_ref[...], cond_ref[...],
                              preferred_element_type=jnp.float32)      # (H, RT)

    x = out_ref[...]                          # (C, RT) current x_t, VMEM-resident

    # Synthetic denoiser: eps = WoutT @ tanh(WxT @ x + WcT @ cond + (t/T)*b)
    h = jnp.tanh(
        jnp.dot(wxT_ref[...], x, preferred_element_type=jnp.float32)
        + hc_ref[...]                         # cached Wc^T @ condition
        + bias_ref[...]                       # (H, 1) -> lane-broadcast to (H, RT)
    )                                         # (H, RT)
    eps = jnp.dot(woutT_ref[...], h, preferred_element_type=jnp.float32)   # (C, RT)

    # Folded DDIM update (mathematically identical to the PyTorch forward):
    #   pred_x0 = (x - sqrt(1-ab)*eps)/sqrt(ab)
    #   x_prev  = sqrt(abp)*pred_x0 + sqrt(1-abp-sigma^2)*eps + sigma*noise
    # folds to  x_prev = c_x*x + c_eps*eps + sigma*noise
    c_x = coef_ref[s, 0]
    c_eps = coef_ref[s, 1]
    sigma = coef_ref[s, 2]
    out_ref[...] = c_x * x + c_eps * eps + sigma * noise_ref[...]


@partial(jax.jit, static_argnames=("row_tile",))
def _ddim_sample(coefs, x_flat, cond_flat, bt, wx, wc, wout, key, *, row_tile):
    """coefs (S,4) f32, x_flat (M,C), cond_flat (M,Dc) -> (M,C)."""
    S = coefs.shape[0]
    M, C = x_flat.shape
    Dc = cond_flat.shape[1]
    H = wx.shape[1]
    RT = row_tile
    Mp = ((M + RT - 1) // RT) * RT                      # pad rows; no tail dropped

    # Lane-dense (feature, rows) layout.
    x0T = jnp.transpose(x_flat.astype(jnp.float32))                 # (C, M)
    condT = jnp.transpose(cond_flat.astype(jnp.float32))            # (Dc, M)
    if Mp != M:
        x0T = jnp.pad(x0T, ((0, 0), (0, Mp - M)))
        condT = jnp.pad(condT, ((0, 0), (0, Mp - M)))

    wxT = jnp.transpose(wx).astype(jnp.float32)         # (H, C)
    wcT = jnp.transpose(wc).astype(jnp.float32)         # (H, Dc)
    woutT = jnp.transpose(wout).astype(jnp.float32)     # (C, H)

    # Per-step denoiser bias (t/T)*b, precomputed once.
    bias_tab = (coefs[:, 3:4] * bt.reshape(1, H))[..., None]        # (S, H, 1)

    # One PRNG dispatch for all steps; streamed per (step, row-tile) block.
    noise = jax.random.normal(key, (S, C, Mp), dtype=jnp.float32)

    grid = (Mp // RT, S)
    outT = pl.pallas_call(
        ddim_fused_kernel,
        out_shape=jax.ShapeDtypeStruct((C, Mp), jnp.float32),
        grid=grid,
        in_specs=[
            pl.BlockSpec(memory_space=pltpu.MemorySpace.SMEM),       # coefs  (S, 4)
            pl.BlockSpec((C, RT), lambda r, s: (0, r)),              # x_T    (C, Mp)
            pl.BlockSpec((Dc, RT), lambda r, s: (0, r)),             # cond   (Dc, Mp)
            pl.BlockSpec((None, C, RT), lambda r, s: (s, 0, r)),     # noise  (S, C, Mp)
            pl.BlockSpec((None, H, 1), lambda r, s: (s, 0, 0)),      # bias   (S, H, 1)
            pl.BlockSpec((H, C), lambda r, s: (0, 0)),               # Wx^T
            pl.BlockSpec((H, Dc), lambda r, s: (0, 0)),              # Wc^T
            pl.BlockSpec((C, H), lambda r, s: (0, 0)),               # Wout^T
        ],
        out_specs=pl.BlockSpec((C, RT), lambda r, s: (0, r)),
        scratch_shapes=[pltpu.VMEM((H, RT), jnp.float32)],           # cached Wc^T@cond
        compiler_params=pltpu.CompilerParams(
            dimension_semantics=("parallel", "arbitrary")),
    )(coefs, x0T, condT, noise, bias_tab, wxT, wcT, woutT)

    return jnp.transpose(outT[:, :M])                                # (M, C)


# ----------------------------------------------------------------------------
# DDIM sampler (schedule precomputed on host in float64, like torch .double()).
# ----------------------------------------------------------------------------
class DDIMSamplerPallas:
    def __init__(self, beta_1, beta_T, T, w=0.0, ddim_timesteps=10, ddim_eta=1.0):
        betas = np.linspace(beta_1, beta_T, T, dtype=np.float64)
        alphas = 1.0 - betas
        self.alphas_bar = np.cumprod(alphas, axis=0)   # float64, like torch buffer
        self.noise_steps = T
        self.w = w                                     # unused in forward (as in ref)
        self.ddim_eta = ddim_eta

        seq = np.asarray(list(range(0, T + 1, T // ddim_timesteps)))[1:] - 1
        prev_seq = np.append(np.array([0]), seq[:-1])
        if seq[0] != 0:
            seq = np.append(np.array([0]), seq)
            prev_seq = np.append(np.array([0]), prev_seq)
        self.ddim_timestep_seq = seq
        self.ddim_timestep_prev_seq = prev_seq

    def _coef_table(self):
        """(S, 4) float32 table [c_x, c_eps, sigma, t/T]; row s = s-th reverse step."""
        S = len(self.ddim_timestep_seq)
        tab = np.zeros((S, 4), dtype=np.float32)
        for s in range(S):
            i = S - 1 - s                               # matches reversed() loop order
            t = int(self.ddim_timestep_seq[i])
            prev_t = int(self.ddim_timestep_prev_seq[i])
            ab = np.float32(self.alphas_bar[t])
            abp = (np.float32(1.0) if self.ddim_timestep_seq[i] == 0
                   else np.float32(self.alphas_bar[prev_t]))
            sigma = np.float32(self.ddim_eta) * np.float32(
                np.sqrt((1.0 - abp) / (1.0 - ab) * (1.0 - ab / abp)))
            dir_coef = np.float32(np.sqrt(1.0 - abp - sigma * sigma))
            sqrt_ab = np.float32(np.sqrt(ab))
            sqrt_abp = np.float32(np.sqrt(abp))
            sqrt_1m_ab = np.float32(np.sqrt(1.0 - ab))
            # Fold the DDIM algebra: x' = c_x*x + c_eps*eps + sigma*noise
            c_x = sqrt_abp / sqrt_ab
            c_eps = dir_coef - sqrt_abp * sqrt_1m_ab / sqrt_ab
            tab[s] = (c_x, c_eps, sigma,
                      np.float32(t) / np.float32(self.noise_steps))
        return tab

    def forward(self, x_T, condition, params, key):
        """x_T: (B, T_h, N, C), condition: (B, T_h, N, Dc) -> (B, T_h, N, C)"""
        # TODO(synk): the original module wraps an arbitrary `model`; a fixed MLP
        # denoiser (params = wx, wc, bt, wout) stands in for it inside the kernel.
        B, Th, N, C = x_T.shape
        Dc = condition.shape[-1]
        M = B * Th * N
        wx, wc, bt, wout = params

        RT = _choose_row_tile(M)
        coefs = jnp.asarray(self._coef_table())                      # (S, 4)
        out_flat = _ddim_sample(coefs, x_T.reshape(M, C), condition.reshape(M, Dc),
                                bt, wx, wc, wout, key, row_tile=RT)  # (M, C)
        return out_flat.reshape(B, Th, N, C)


# ----------------------------------------------------------------------------
# Pure-JAX reference using the ORIGINAL (unfolded) DDIM math, same noise stream.
# ----------------------------------------------------------------------------
def _reference_forward(sampler, x_T, condition, params, key):
    wx, wc, bt, wout = params
    B, Th, N, C = x_T.shape
    Dc = condition.shape[-1]
    M = B * Th * N
    S = len(sampler.ddim_timestep_seq)
    RT = _choose_row_tile(M)
    Mp = ((M + RT - 1) // RT) * RT
    noise = jax.random.normal(key, (S, C, Mp), dtype=jnp.float32)[:, :, :M]

    x = x_T.reshape(M, C).astype(jnp.float32)
    cond = condition.reshape(M, Dc).astype(jnp.float32)
    for s in range(S):
        i = S - 1 - s
        t = int(sampler.ddim_timestep_seq[i])
        prev_t = int(sampler.ddim_timestep_prev_seq[i])
        ab = np.float32(sampler.alphas_bar[t])
        abp = (np.float32(1.0) if sampler.ddim_timestep_seq[i] == 0
               else np.float32(sampler.alphas_bar[prev_t]))
        t_scaled = np.float32(t) / np.float32(sampler.noise_steps)
        h = jnp.tanh(x @ wx + cond @ wc + t_scaled * bt)
        eps = h @ wout
        pred_x0 = (x - np.float32(np.sqrt(1.0 - ab)) * eps) / np.float32(np.sqrt(ab))
        sigma = np.float32(sampler.ddim_eta) * np.float32(
            np.sqrt((1.0 - abp) / (1.0 - ab) * (1.0 - ab / abp)))
        dir_c = np.float32(np.sqrt(1.0 - abp - sigma * sigma))
        x = (np.float32(np.sqrt(abp)) * pred_x0 + dir_c * eps
             + sigma * jnp.transpose(noise[s]))
    return x.reshape(B, Th, N, C)


# ----------------------------------------------------------------------------
if __name__ == "__main__":
    # small shapes consistent with X_T (B, T_h, N, 3)
    B, Th, N, C, Dc = 2, 8, 16, 3, 4     # M = 256 rows -> one lane-dense tile
    T, DDIM_STEPS = 100, 10
    H = HIDDEN

    key = jax.random.PRNGKey(0)
    kx, kc, k1, k2, k3, k4, kn = jax.random.split(key, 7)

    x_T = jax.random.normal(kx, (B, Th, N, C), dtype=jnp.float32)
    condition = jax.random.normal(kc, (B, Th, N, Dc), dtype=jnp.float32)

    # deterministic synthetic denoiser parameters
    wx = 0.1 * jax.random.normal(k1, (C, H), dtype=jnp.float32)
    wc = 0.1 * jax.random.normal(k2, (Dc, H), dtype=jnp.float32)
    bt = 0.1 * jax.random.normal(k3, (1, H), dtype=jnp.float32)
    wout = 0.1 * jax.random.normal(k4, (H, C), dtype=jnp.float32)

    sampler = DDIMSamplerPallas(beta_1=1e-4, beta_T=0.02, T=T,
                                w=0.0, ddim_timesteps=DDIM_STEPS, ddim_eta=1.0)
    out = sampler.forward(x_T, condition, (wx, wc, bt, wout), kn)
    out = jax.block_until_ready(out)

    assert out.shape == (B, Th, N, C)
    assert bool(jnp.all(jnp.isfinite(out)))

    # correctness vs unfolded pure-JAX reference (identical noise stream)
    ref = _reference_forward(sampler, x_T, condition, (wx, wc, bt, wout), kn)
    err = float(jnp.max(jnp.abs(out - ref)))
    assert err < 1e-2, f"mismatch vs reference: {err}"

    print("KERNEL_OK")
</pallas_src>

<mosaic_0001>
module attributes {stable_mosaic.version = 11 : i64} {
  func.func @ddim_fused_kernel(%arg0: i32, %arg1: i32, %arg2: memref<11x4xf32, #tpu.memory_space<smem>>, %arg3: memref<3x256xf32, #tpu.memory_space<vmem>>, %arg4: memref<4x256xf32, #tpu.memory_space<vmem>>, %arg5: memref<1x3x256xf32, #tpu.memory_space<vmem>>, %arg6: memref<1x32x1xf32, #tpu.memory_space<vmem>>, %arg7: memref<32x3xf32, #tpu.memory_space<vmem>>, %arg8: memref<32x4xf32, #tpu.memory_space<vmem>>, %arg9: memref<3x32xf32, #tpu.memory_space<vmem>>, %arg10: memref<3x256xf32, #tpu.memory_space<vmem>>, %arg11: memref<32x256xf32, #tpu.memory_space<vmem>>) attributes {dimension_semantics = [#tpu.dimension_semantics<parallel>, #tpu.dimension_semantics<arbitrary>], iteration_bounds = array<i64: 1, 11>, scalar_prefetch = 0 : i64, scratch_operands = 1 : i64, tpu.core_type = #tpu.core_type<tc>, window_params = [{transform_indices = @transform_0, window_bounds = array<i64: 11, 4>}, {transform_indices = @transform_1, window_bounds = array<i64: 3, 256>}, {transform_indices = @transform_2, window_bounds = array<i64: 4, 256>}, {transform_indices = @transform_3, window_bounds = array<i64: 1, 3, 256>}, {transform_indices = @transform_4, window_bounds = array<i64: 1, 32, 1>}, {pipeline_mode = #tpu.pipeline_mode<synchronous>, transform_indices = @transform_5, window_bounds = array<i64: 32, 3>}, {pipeline_mode = #tpu.pipeline_mode<synchronous>, transform_indices = @transform_6, window_bounds = array<i64: 32, 4>}, {pipeline_mode = #tpu.pipeline_mode<synchronous>, transform_indices = @transform_7, window_bounds = array<i64: 3, 32>}, {transform_indices = @transform_8, window_bounds = array<i64: 3, 256>}]} {
    %c0_i32 = arith.constant 0 : i32
    %0 = arith.cmpi eq, %arg1, %c0_i32 : i32
    %1 = arith.extui %0 : i1 to i32
    %c0_i32_0 = arith.constant 0 : i32
    %2 = arith.cmpi ne, %1, %c0_i32_0 : i32
    scf.if %2 {
      %c0_18 = arith.constant 0 : index
      %c0_19 = arith.constant 0 : index
      %32 = vector.load %arg3[%c0_18, %c0_19] : memref<3x256xf32, #tpu.memory_space<vmem>>, vector<3x256xf32>
      %c0_20 = arith.constant 0 : index
      %c0_21 = arith.constant 0 : index
      %33 = vector.load %arg10[%c0_20, %c0_21] : memref<3x256xf32, #tpu.memory_space<vmem>>, vector<3x256xf32>
      tpu.vector_store %arg10[%c0_20, %c0_21], %32 {strides = array<i32>} : memref<3x256xf32, #tpu.memory_space<vmem>>, vector<3x256xf32>,
      %c0_22 = arith.constant 0 : index
      %c0_23 = arith.constant 0 : index
      %34 = vector.load %arg8[%c0_22, %c0_23] : memref<32x4xf32, #tpu.memory_space<vmem>>, vector<32x4xf32>
      %c0_24 = arith.constant 0 : index
      %c0_25 = arith.constant 0 : index
      %35 = vector.load %arg4[%c0_24, %c0_25] : memref<4x256xf32, #tpu.memory_space<vmem>>, vector<4x256xf32>
      %cst_26 = arith.constant dense<0.000000e+00> : vector<32x256xf32>
      %36 = tpu.matmul %34, %35, %cst_26 {dimension_numbers = #tpu.dot_dimension_numbers<[1], [0], [0], [1], [0, 0, 1, 1], [], []>} : vector<32x4xf32>, vector<4x256xf32>, vector<32x256xf32> -> vector<32x256xf32>
      %c0_27 = arith.constant 0 : index
      %c0_28 = arith.constant 0 : index
      %37 = vector.load %arg11[%c0_27, %c0_28] : memref<32x256xf32, #tpu.memory_space<vmem>>, vector<32x256xf32>
      tpu.vector_store %arg11[%c0_27, %c0_28], %36 {strides = array<i32>} : memref<32x256xf32, #tpu.memory_space<vmem>>, vector<32x256xf32>,
    } else {
    }
    %c0 = arith.constant 0 : index
    %c0_1 = arith.constant 0 : index
    %3 = vector.load %arg10[%c0, %c0_1] : memref<3x256xf32, #tpu.memory_space<vmem>>, vector<3x256xf32>
    %c0_2 = arith.constant 0 : index
    %c0_3 = arith.constant 0 : index
    %4 = vector.load %arg7[%c0_2, %c0_3] : memref<32x3xf32, #tpu.memory_space<vmem>>, vector<32x3xf32>
    %cst = arith.constant dense<0.000000e+00> : vector<32x256xf32>
    %5 = tpu.matmul %4, %3, %cst {dimension_numbers = #tpu.dot_dimension_numbers<[1], [0], [0], [1], [0, 0, 1, 1], [], []>} : vector<32x3xf32>, vector<3x256xf32>, vector<32x256xf32> -> vector<32x256xf32>
    %c0_4 = arith.constant 0 : index
    %c0_5 = arith.constant 0 : index
    %6 = vector.load %arg11[%c0_4, %c0_5] : memref<32x256xf32, #tpu.memory_space<vmem>>, vector<32x256xf32>
    %7 = arith.addf %5, %6 : vector<32x256xf32>
    %c0_6 = arith.constant 0 : index
    %c0_7 = arith.constant 0 : index
    %c0_8 = arith.constant 0 : index
    %8 = vector.load %arg6[%c0_6, %c0_7, %c0_8] : memref<1x32x1xf32, #tpu.memory_space<vmem>>, vector<1x32x1xf32>
    %9 = vector.shape_cast %8 : vector<1x32x1xf32> to vector<32x1xf32>
    %10 = vector.broadcast %9 : vector<32x1xf32> to vector<32x256xf32>
    %11 = arith.addf %7, %10 : vector<32x256xf32>
    %12 = math.tanh %11 : vector<32x256xf32>
    %c0_9 = arith.constant 0 : index
    %c0_10 = arith.constant 0 : index
    %13 = vector.load %arg9[%c0_9, %c0_10] : memref<3x32xf32, #tpu.memory_space<vmem>>, vector<3x32xf32>
    %cst_11 = arith.constant dense<0.000000e+00> : vector<3x256xf32>
    %14 = tpu.matmul %13, %12, %cst_11 {dimension_numbers = #tpu.dot_dimension_numbers<[1], [0], [0], [1], [0, 0, 1, 1], [], []>} : vector<3x32xf32>, vector<32x256xf32>, vector<3x256xf32> -> vector<3x256xf32>
    %15 = arith.index_cast %arg1 : i32 to index
    %c0_12 = arith.constant 0 : index
    %16 = memref.load %arg2[%15, %c0_12] : memref<11x4xf32, #tpu.memory_space<smem>>
    %17 = arith.index_cast %arg1 : i32 to index
    %c1 = arith.constant 1 : index
    %18 = memref.load %arg2[%17, %c1] : memref<11x4xf32, #tpu.memory_space<smem>>
    %19 = arith.index_cast %arg1 : i32 to index
    %c2 = arith.constant 2 : index
    %20 = memref.load %arg2[%19, %c2] : memref<11x4xf32, #tpu.memory_space<smem>>
    %21 = vector.broadcast %16 : f32 to vector<3x256xf32>
    %22 = arith.mulf %21, %3 : vector<3x256xf32>
    %23 = vector.broadcast %18 : f32 to vector<3x256xf32>
    %24 = arith.mulf %23, %14 : vector<3x256xf32>
    %25 = arith.addf %22, %24 : vector<3x256xf32>
    %c0_13 = arith.constant 0 : index
    %c0_14 = arith.constant 0 : index
    %c0_15 = arith.constant 0 : index
    %26 = vector.load %arg5[%c0_13, %c0_14, %c0_15] : memref<1x3x256xf32, #tpu.memory_space<vmem>>, vector<1x3x256xf32>
    %27 = vector.shape_cast %26 : vector<1x3x256xf32> to vector<3x256xf32>
    %28 = vector.broadcast %20 : f32 to vector<3x256xf32>
    %29 = arith.mulf %28, %27 : vector<3x256xf32>
    %30 = arith.addf %25, %29 : vector<3x256xf32>
    %c0_16 = arith.constant 0 : index
    %c0_17 = arith.constant 0 : index
    %31 = vector.load %arg10[%c0_16, %c0_17] : memref<3x256xf32, #tpu.memory_space<vmem>>, vector<3x256xf32>
    tpu.vector_store %arg10[%c0_16, %c0_17], %30 {strides = array<i32>} : memref<3x256xf32, #tpu.memory_space<vmem>>, vector<3x256xf32>,
    return
  }
  func.func @transform_0(%arg0: i32, %arg1: i32) -> (i32, i32) {
    %c0_i32 = arith.constant 0 : i32
    %c0_i32_0 = arith.constant 0 : i32
    %c0_i32_1 = arith.constant 0 : i32
    return %c0_i32, %c0_i32_0 : i32, i32
  }
  func.func @transform_1(%arg0: i32, %arg1: i32) -> (i32, i32) {
    %c0_i32 = arith.constant 0 : i32
    %c0_i32_0 = arith.constant 0 : i32
    return %c0_i32, %arg0 : i32, i32
  }
  func.func @transform_2(%arg0: i32, %arg1: i32) -> (i32, i32) {
    %c0_i32 = arith.constant 0 : i32
    %c0_i32_0 = arith.constant 0 : i32
    return %c0_i32, %arg0 : i32, i32
  }
  func.func @transform_3(%arg0: i32, %arg1: i32) -> (i32, i32, i32) {
    %c0_i32 = arith.constant 0 : i32
    %c0_i32_0 = arith.constant 0 : i32
    return %arg1, %c0_i32, %arg0 : i32, i32, i32
  }
  func.func @transform_4(%arg0: i32, %arg1: i32) -> (i32, i32, i32) {
    %c0_i32 = arith.constant 0 : i32
    %c0_i32_0 = arith.constant 0 : i32
    %c0_i32_1 = arith.constant 0 : i32
    return %arg1, %c0_i32, %c0_i32_0 : i32, i32, i32
  }
  func.func @transform_5(%arg0: i32, %arg1: i32) -> (i32, i32) {
    %c0_i32 = arith.constant 0 : i32
    %c0_i32_0 = arith.constant 0 : i32
    %c0_i32_1 = arith.constant 0 : i32
    return %c0_i32, %c0_i32_0 : i32, i32
  }
  func.func @transform_6(%arg0: i32, %arg1: i32) -> (i32, i32) {
    %c0_i32 = arith.constant 0 : i32
    %c0_i32_0 = arith.constant 0 : i32
    %c0_i32_1 = arith.constant 0 : i32
    return %c0_i32, %c0_i32_0 : i32, i32
  }
  func.func @transform_7(%arg0: i32, %arg1: i32) -> (i32, i32) {
    %c0_i32 = arith.constant 0 : i32
    %c0_i32_0 = arith.constant 0 : i32
    %c0_i32_1 = arith.constant 0 : i32
    return %c0_i32, %c0_i32_0 : i32, i32
  }
  func.func @transform_8(%arg0: i32, %arg1: i32) -> (i32, i32) {
    %c0_i32 = arith.constant 0 : i32
    %c0_i32_0 = arith.constant 0 : i32
    return %c0_i32, %arg0 : i32, i32
  }
}

</mosaic_0001>

<llo_original>
// kernel: _ddim_sample.1
$region0: #{_ddim_sample.1}
  #allocation0 [shape = 'u32[]', space=smem, size = 0x4, offset = 0x4, fixed_abs, tag = 'smem constant byte address 0x4 - core index']
  #allocation1 [shape = 'u32[72,128]{1,0:T(1,128)}', space=vmem, size = 0x9000, scoped, tag = 'internal scratch']
  #allocation2 [shape = 'f32[32,256]{1,0:T(8,128)}', space=vmem, size = 0x8000, scoped, tag = 'scratch operand']
  %s0 = inlined_call_operand.vmem [shape: f32[11,4], index: 0, kind: input, shape index: {}]
  %s1 = inlined_call_operand.vmem [shape: f32[3,256], index: 1, kind: input, shape index: {}]
  %s2 = inlined_call_operand.vmem [shape: f32[4,256], index: 2, kind: input, shape index: {}]
  %s3 = inlined_call_operand.vmem [shape: f32[11,3,256], index: 3, kind: input, shape index: {}]
  %s4 = inlined_call_operand.vmem [shape: f32[11,32,1], index: 4, kind: input, shape index: {}]
  %s5 = inlined_call_operand.vmem [shape: f32[32,3], index: 5, kind: input, shape index: {}]
  %s6 = inlined_call_operand.vmem [shape: f32[32,4], index: 6, kind: input, shape index: {}]
  %s7 = inlined_call_operand.vmem [shape: f32[3,32], index: 7, kind: input, shape index: {}]
  %s8 = inlined_call_operand.hbm [shape: f32[3,256], index: 8, kind: output, shape index: {}]
  %s9 = sld [smem:[#allocation0]]
  $region73: #{_ddim_sample.1} parent=0
    _
  %s11 = ssub.s32 1, %s9
  %s12 = scalar_select 0, %s11, %s9
  $region1: #{_ddim_sample.1} parent=0
    #allocation3 [shape = 'u8[8192]{0}', space=smem, size = 0x2000, scoped, tag = 'input window, operand 0, single buffered']
    #allocation4 [shape = 's32[2]{0}', space=sflag, size = 0x8, scoped, tag = 'scoped memory for _ddim_sample.1']
    #allocation5 [shape = 's32[2]{0}', space=sflag, size = 0x8, scoped, tag = 'scoped memory for _ddim_sample.1']
    #allocation6 [shape = 'u8[4096]{0}', space=vmem, size = 0x1000, scoped, tag = 'output window, operand 0, single buffered']
    %13 = vsyncpa [#allocation5], 0
    %14 = vsyncpa [#allocation4], 0
    loop: start=0, step=1, limit=13
    $region2: #{_ddim_sample.1} parent=1 // loop_pre_header
      _
    $region3: #{_ddim_sample.1} parent=1 // loop_header
      %s16 = sphi 0, %s20
      %p17 = scmp.ge.s32.totalorder %s16, 13
      %s23 = sphi 0, %s35
      %s24 = sphi 0, %s31
      %s25 = sphi 0, %s23
      %s26 = sphi 0, %s24
      %s27 = sphi 0, %s25
      %s28 = sphi 0, %s26
      %s36 = sphi 0, %s36
      %s38 = sphi 0, %s36
      %s39 = sphi 0, %s38
      %s53 = sphi 0, %s39
      %s59 = sphi 0, %s61
      %s62 = sphi 0, %s59
      %s63 = sphi 0, %s62
      %s79 = sphi 0, %s63
      %s85 = sphi 0, %s87
      %s88 = sphi 0, %s85
      %s89 = sphi 0, %s88
      %s105 = sphi 0, %s89
      %s113 = sphi 0, %s115
      %s116 = sphi 0, %s113
      %s117 = sphi 0, %s116
      %s133 = sphi 0, %s117
      %s139 = sphi 0, %s141
      %s142 = sphi 0, %s139
      %s143 = sphi 0, %s142
      %s159 = sphi 0, %s143
      %s163 = sphi 0, %s163
      %s165 = sphi 0, %s163
      %s166 = sphi 0, %s165
      %s180 = sphi 0, %s166
      %s184 = sphi 0, %s184
      %s186 = sphi 0, %s184
      %s187 = sphi 0, %s186
      %s201 = sphi 0, %s187
      %s205 = sphi 0, %s205
      %s207 = sphi 0, %s205
      %s208 = sphi 0, %s207
      %s222 = sphi 0, %s208
      %s228 = sphi 0, %s230
      %s231 = sphi 0, %s228
      %s232 = sphi 0, %s231
      %s248 = sphi 0, %s232
    $region4: #{_ddim_sample.1} parent=1 // loop_header_branch
      %19 = sbr.rel (%p17) target = $region8
    $region5: #{_ddim_sample.1} parent=1 // loop_body
      %s21 = ssub.s32 %s16, 1
      %s22 = ssub.s32 %s16, 2
      %s29 = sadd.s32 1, %s24
      %p30 = scmp.ge.s32.totalorder %s29, 11
      %s31 = scalar_select %p30, 0, %s29
      %s32 = sadd.s32 1, %s23
      %s33 = scalar_select %p30, %s32, %s23
      %p34 = scmp.ge.s32.totalorder %s33, 1
      %s35 = scalar_select %p34, 0, %s33
      %s37 = sadd.s32 %s36, 1
      %p40 = scmp.eq.s32.totalorder %s16, 10
      %p41 = scmp.ne.s32.totalorder %s36, %s38
      %p42 = scmp.eq.s32.totalorder %s16, 0
      %p43 = por %p41, %p42
      %p44 = scmp.ne.s32.totalorder %s36, %s38
      %p45 = scmp.eq.s32.totalorder %s21, 10
      %p46 = por %p44, %p45
      %p47 = scmp.ne.s32.totalorder %s38, %s39
      %p48 = scmp.eq.s32.totalorder %s21, 0
      %p49 = por %p47, %p48
      %p50 = scmp.ne.s32.totalorder %s38, %s39
      %p51 = scmp.eq.s32.totalorder %s22, 10
      %p52 = por %p50, %p51
      %p54 = scmp.ne.s32.totalorder %s39, %s53
      %p55 = scmp.eq.s32.totalorder %s22, 0
      %p56 = por %p54, %p55
      %s57 = ssub.s32 %s23, %s35
      %p58 = scmp.eq.s32.totalorder %s57, 0
      %s60 = sadd.s32 %s59, 1
      %s61 = scalar_select %p58, %s59, %s60
      %p64 = pneg %p58
      %p65 = scmp.eq.s32.totalorder %s16, 10
      %p66 = por %p64, %p65
      %p67 = scmp.ne.s32.totalorder %s59, %s62
      %p68 = scmp.eq.s32.totalorder %s16, 0
      %p69 = por %p67, %p68
      %p70 = scmp.ne.s32.totalorder %s59, %s62
      %p71 = scmp.eq.s32.totalorder %s21, 10
      %p72 = por %p70, %p71
      %p73 = scmp.ne.s32.totalorder %s62, %s63
      %p74 = scmp.eq.s32.totalorder %s21, 0
      %p75 = por %p73, %p74
      %p76 = scmp.ne.s32.totalorder %s62, %s63
      %p77 = scmp.eq.s32.totalorder %s22, 10
      %p78 = por %p76, %p77
      %p80 = scmp.ne.s32.totalorder %s63, %s79
      %p81 = scmp.eq.s32.totalorder %s22, 0
      %p82 = por %p80, %p81
      %s83 = ssub.s32 %s23, %s35
      %p84 = scmp.eq.s32.totalorder %s83, 0
      %s86 = sadd.s32 %s85, 1
      %s87 = scalar_select %p84, %s85, %s86
      %p90 = pneg %p84
      %p91 = scmp.eq.s32.totalorder %s16, 10
      %p92 = por %p90, %p91
      %p93 = scmp.ne.s32.totalorder %s85, %s88
      %p94 = scmp.eq.s32.totalorder %s16, 0
      %p95 = por %p93, %p94
      %p96 = scmp.ne.s32.totalorder %s85, %s88
      %p97 = scmp.eq.s32.totalorder %s21, 10
      %p98 = por %p96, %p97
      %p99 = scmp.ne.s32.totalorder %s88, %s89
      %p100 = scmp.eq.s32.totalorder %s21, 0
      %p101 = por %p99, %p100
      %p102 = scmp.ne.s32.totalorder %s88, %s89
      %p103 = scmp.eq.s32.totalorder %s22, 10
      %p104 = por %p102, %p103
      %p106 = scmp.ne.s32.totalorder %s89, %s105
      %p107 = scmp.eq.s32.totalorder %s22, 0
      %p108 = por %p106, %p107
      %s109 = ssub.s32 %s24, %s31
      %s110 = ssub.s32 %s23, %s35
      %s111 = sor.u32 %s109, %s110
      %p112 = scmp.eq.s32.totalorder %s111, 0
      %s114 = sadd.s32 %s113, 1
      %s115 = scalar_select %p112, %s113, %s114
      %p118 = pneg %p112
      %p119 = scmp.eq.s32.totalorder %s16, 10
      %p120 = por %p118, %p119
      %p121 = scmp.ne.s32.totalorder %s113, %s116
      %p122 = scmp.eq.s32.totalorder %s16, 0
      %p123 = por %p121, %p122
      %p124 = scmp.ne.s32.totalorder %s113, %s116
      %p125 = scmp.eq.s32.totalorder %s21, 10
      %p126 = por %p124, %p125
      %p127 = scmp.ne.s32.totalorder %s116, %s117
      %p128 = scmp.eq.s32.totalorder %s21, 0
      %p129 = por %p127, %p128
      %p130 = scmp.ne.s32.totalorder %s116, %s117
      %p131 = scmp.eq.s32.totalorder %s22, 10
      %p132 = por %p130, %p131
      %p134 = scmp.ne.s32.totalorder %s117, %s133
      %p135 = scmp.eq.s32.totalorder %s22, 0
      %p136 = por %p134, %p135
      %s137 = ssub.s32 %s24, %s31
      %p138 = scmp.eq.s32.totalorder %s137, 0
      %s140 = sadd.s32 %s139, 1
      %s141 = scalar_select %p138, %s139, %s140
      %p144 = pneg %p138
      %p145 = scmp.eq.s32.totalorder %s16, 10
      %p146 = por %p144, %p145
      %p147 = scmp.ne.s32.totalorder %s139, %s142
      %p148 = scmp.eq.s32.totalorder %s16, 0
      %p149 = por %p147, %p148
      %p150 = scmp.ne.s32.totalorder %s139, %s142
      %p151 = scmp.eq.s32.totalorder %s21, 10
      %p152 = por %p150, %p151
      %p153 = scmp.ne.s32.totalorder %s142, %s143
      %p154 = scmp.eq.s32.totalorder %s21, 0
      %p155 = por %p153, %p154
      %p156 = scmp.ne.s32.totalorder %s142, %s143
      %p157 = scmp.eq.s32.totalorder %s22, 10
      %p158 = por %p156, %p157
      %p160 = scmp.ne.s32.totalorder %s143, %s159
      %p161 = scmp.eq.s32.totalorder %s22, 0
      %p162 = por %p160, %p161
      %s164 = sadd.s32 %s163, 1
      %p167 = scmp.eq.s32.totalorder %s16, 10
      %p168 = scmp.ne.s32.totalorder %s163, %s165
      %p169 = scmp.eq.s32.totalorder %s16, 0
      %p170 = por %p168, %p169
      %p171 = scmp.ne.s32.totalorder %s163, %s165
      %p172 = scmp.eq.s32.totalorder %s21, 10
      %p173 = por %p171, %p172
      %p174 = scmp.ne.s32.totalorder %s165, %s166
      %p175 = scmp.eq.s32.totalorder %s21, 0
      %p176 = por %p174, %p175
      %p177 = scmp.ne.s32.totalorder %s165, %s166
      %p178 = scmp.eq.s32.totalorder %s22, 10
      %p179 = por %p177, %p178
      %p181 = scmp.ne.s32.totalorder %s166, %s180
      %p182 = scmp.eq.s32.totalorder %s22, 0
      %p183 = por %p181, %p182
      %s185 = sadd.s32 %s184, 1
      %p188 = scmp.eq.s32.totalorder %s16, 10
      %p189 = scmp.ne.s32.totalorder %s184, %s186
      %p190 = scmp.eq.s32.totalorder %s16, 0
      %p191 = por %p189, %p190
      %p192 = scmp.ne.s32.totalorder %s184, %s186
      %p193 = scmp.eq.s32.totalorder %s21, 10
      %p194 = por %p192, %p193
      %p195 = scmp.ne.s32.totalorder %s186, %s187
      %p196 = scmp.eq.s32.totalorder %s21, 0
      %p197 = por %p195, %p196
      %p198 = scmp.ne.s32.totalorder %s186, %s187
      %p199 = scmp.eq.s32.totalorder %s22, 10
      %p200 = por %p198, %p199
      %p202 = scmp.ne.s32.totalorder %s187, %s201
      %p203 = scmp.eq.s32.totalorder %s22, 0
      %p204 = por %p202, %p203
      %s206 = sadd.s32 %s205, 1
      %p209 = scmp.eq.s32.totalorder %s16, 10
      %p210 = scmp.ne.s32.totalorder %s205, %s207
      %p211 = scmp.eq.s32.totalorder %s16, 0
      %p212 = por %p210, %p211
      %p213 = scmp.ne.s32.totalorder %s205, %s207
      %p214 = scmp.eq.s32.totalorder %s21, 10
      %p215 = por %p213, %p214
      %p216 = scmp.ne.s32.totalorder %s207, %s208
      %p217 = scmp.eq.s32.totalorder %s21, 0
      %p218 = por %p216, %p217
      %p219 = scmp.ne.s32.totalorder %s207, %s208
      %p220 = scmp.eq.s32.totalorder %s22, 10
      %p221 = por %p219, %p220
      %p223 = scmp.ne.s32.totalorder %s208, %s222
      %p224 = scmp.eq.s32.totalorder %s22, 0
      %p225 = por %p223, %p224
      %s226 = ssub.s32 %s23, %s35
      %p227 = scmp.eq.s32.totalorder %s226, 0
      %s229 = sadd.s32 %s228, 1
      %s230 = scalar_select %p227, %s228, %s229
      %p233 = pneg %p227
      %p234 = scmp.eq.s32.totalorder %s16, 10
      %p235 = por %p233, %p234
      %p236 = scmp.ne.s32.totalorder %s228, %s231
      %p237 = scmp.eq.s32.totalorder %s16, 0
      %p238 = por %p236, %p237
      %p239 = scmp.ne.s32.totalorder %s228, %s231
      %p240 = scmp.eq.s32.totalorder %s21, 10
      %p241 = por %p239, %p240
      %p242 = scmp.ne.s32.totalorder %s231, %s232
      %p243 = scmp.eq.s32.totalorder %s21, 0
      %p244 = por %p242, %p243
      %p245 = scmp.ne.s32.totalorder %s231, %s232
      %p246 = scmp.eq.s32.totalorder %s22, 10
      %p247 = por %p245, %p246
      %p249 = scmp.ne.s32.totalorder %s232, %s248
      %p250 = scmp.eq.s32.totalorder %s22, 0
      %p251 = por %p249, %p250
      %p252 = scmp.le.s32.totalorder 1, %s16
      %p253 = scmp.lt.s32.totalorder %s16, 12
      %p254 = pnand %p252, %p253
      %p255 = pneg %p254
      // Predicated region
      $region9: #{_ddim_sample.1} parent=5 // pred_check
        _
      $region10: #{_ddim_sample.1} parent=5 // pred_check_branch
        %257 = sbr.rel (%p254) target = $region12
      $region11: #{_ddim_sample.1} parent=5 // pred_region
        %s258 = ssub.s32 %s16, 1
        // Predicated region
        $region13: #{_ddim_sample.1} parent=11 // pred_check
          %p259 = pneg %p49
        $region14: #{_ddim_sample.1} parent=11 // pred_check_branch
          %261 = sbr.rel (%p259) target = $region16
        $region15: #{_ddim_sample.1} parent=11 // pred_region
          %263 = vsyncadd [#allocation5], 0
          %s264 = sshll.u32 %s0, 4
          %s265 = int_to_ptr.vmem [resolvable:$true] %s264
          %270 = dma.vmem_to_smem %s265, 256, [#allocation3], [#allocation5], 128, 128, 8
        $region16: #{_ddim_sample.1} parent=11 // pred_fallthru
          _
        // Predicated region
        $region17: #{_ddim_sample.1} parent=11 // pred_check
          %p271 = pneg %p75
        $region18: #{_ddim_sample.1} parent=11 // pred_check_branch
          %273 = sbr.rel (%p271) target = $region20
        $region19: #{_ddim_sample.1} parent=11 // pred_region
          %s274 = smul.u32 2, %s25
          %p275 = scmp.lt.s32.totalorder %s274, 1
          %s276 = scalar_select %p275, %s274, 1
          %s277 = smul.addr %s276, 4
          %s278 = scalar_lea.vmem %s1, %s277
          %s279 = smul.u32 2, %s25
        $region20: #{_ddim_sample.1} parent=11 // pred_fallthru
          _
        // Predicated region
        $region21: #{_ddim_sample.1} parent=11 // pred_check
          %p280 = pneg %p101
        $region22: #{_ddim_sample.1} parent=11 // pred_check_branch
          %282 = sbr.rel (%p280) target = $region24
        $region23: #{_ddim_sample.1} parent=11 // pred_region
          %s283 = smul.u32 2, %s25
          %p284 = scmp.lt.s32.totalorder %s283, 1
          %s285 = scalar_select %p284, %s283, 1
          %s286 = smul.addr %s285, 4
          %s287 = scalar_lea.vmem %s2, %s286
          %s288 = smul.u32 2, %s25
        $region24: #{_ddim_sample.1} parent=11 // pred_fallthru
          _
        // Predicated region
        $region25: #{_ddim_sample.1} parent=11 // pred_check
          %p289 = pneg %p176
        $region26: #{_ddim_sample.1} parent=11 // pred_check_branch
          %291 = sbr.rel (%p289) target = $region28
        $region27: #{_ddim_sample.1} parent=11 // pred_region
          _
        $region28: #{_ddim_sample.1} parent=11 // pred_fallthru
          _
        // Predicated region
        $region29: #{_ddim_sample.1} parent=11 // pred_check
          %p292 = pneg %p197
        $region30: #{_ddim_sample.1} parent=11 // pred_check_branch
          %294 = sbr.rel (%p292) target = $region32
        $region31: #{_ddim_sample.1} parent=11 // pred_region
          _
        $region32: #{_ddim_sample.1} parent=11 // pred_fallthru
          _
        // Predicated region
        $region33: #{_ddim_sample.1} parent=11 // pred_check
          %p295 = pneg %p218
        $region34: #{_ddim_sample.1} parent=11 // pred_check_branch
          %297 = sbr.rel (%p295) target = $region36
        $region35: #{_ddim_sample.1} parent=11 // pred_region
          _
        $region36: #{_ddim_sample.1} parent=11 // pred_fallthru
          _
      $region12: #{_ddim_sample.1} parent=5 // pred_fallthru
        _
      %p298 = scmp.lt.s32.totalorder %s16, 11
      // Predicated region
      $region37: #{_ddim_sample.1} parent=5 // pred_check
        %p299 = pneg %p298
      $region38: #{_ddim_sample.1} parent=5 // pred_check_branch
        %301 = sbr.rel (%p299) target = $region40
      $region39: #{_ddim_sample.1} parent=5 // pred_region
        // Predicated region
        $region41: #{_ddim_sample.1} parent=39 // pred_check
          %p302 = pneg %p123
        $region42: #{_ddim_sample.1} parent=39 // pred_check_branch
          %304 = sbr.rel (%p302) target = $region44
        $region43: #{_ddim_sample.1} parent=39 // pred_region
          %s305 = smul.u32 2, %s23
          %p306 = scmp.lt.s32.totalorder %s24, 10
          %s307 = scalar_select %p306, %s24, 10
          %p308 = scmp.lt.s32.totalorder %s305, 1
          %s309 = scalar_select %p308, %s305, 1
          %s310 = smul.addr %s307, 2
          %s311 = sadd.s32 %s309, %s310
          %s312 = smul.addr %s311, 4
          %s313 = scalar_lea.vmem %s3, %s312
          %s314 = smul.u32 2, %s23
        $region44: #{_ddim_sample.1} parent=39 // pred_fallthru
          _
        // Predicated region
        $region45: #{_ddim_sample.1} parent=39 // pred_check
          %p315 = pneg %p149
        $region46: #{_ddim_sample.1} parent=39 // pred_check_branch
          %317 = sbr.rel (%p315) target = $region48
        $region47: #{_ddim_sample.1} parent=39 // pred_region
          %p318 = scmp.lt.s32.totalorder %s24, 10
          %s319 = scalar_select %p318, %s24, 10
          %s320 = smul.addr %s319, 4
          %s321 = smul.addr %s320, 8
          %s322 = scalar_lea.vmem %s4, %s321
        $region48: #{_ddim_sample.1} parent=39 // pred_fallthru
          _
      $region40: #{_ddim_sample.1} parent=5 // pred_fallthru
        _
      %p323 = scmp.le.s32.totalorder 1, %s16
      %p324 = scmp.lt.s32.totalorder %s16, 12
      %p325 = pnand %p323, %p324
      %p326 = pneg %p325
      // Predicated region
      $region49: #{_ddim_sample.1} parent=5 // pred_check
        _
      $region50: #{_ddim_sample.1} parent=5 // pred_check_branch
        %328 = sbr.rel (%p325) target = $region52
      $region51: #{_ddim_sample.1} parent=5 // pred_region
        %s329 = ssub.s32 %s16, 1
        // Predicated region
        $region53: #{_ddim_sample.1} parent=51 // pred_check
          %p330 = pneg %p49
        $region54: #{_ddim_sample.1} parent=51 // pred_check_branch
          %332 = sbr.rel (%p330) target = $region56
        $region55: #{_ddim_sample.1} parent=51 // pred_region
          %334 = dma.done [#allocation5], 256
        $region56: #{_ddim_sample.1} parent=51 // pred_fallthru
          _
        %335 = sfence
        %p336 = pneg %p49
        %p337 = pneg %p46
        %s338 = smul.u32 2, %s25
        %p339 = scmp.lt.s32.totalorder %s338, 1
        %s340 = scalar_select %p339, %s338, 1
        %s341 = smul.addr %s340, 4
        %s342 = scalar_lea.vmem %s1, %s341
        %p343 = pneg %p75
        %p344 = pneg %p72
        %s345 = smul.u32 2, %s25
        %p346 = scmp.lt.s32.totalorder %s345, 1
        %s347 = scalar_select %p346, %s345, 1
        %s348 = smul.addr %s347, 4
        %s349 = scalar_lea.vmem %s2, %s348
        %p350 = pneg %p101
        %p351 = pneg %p98
        %s352 = smul.u32 2, %s25
        %p353 = scmp.lt.s32.totalorder %s26, 10
        %s354 = scalar_select %p353, %s26, 10
        %p355 = scmp.lt.s32.totalorder %s352, 1
        %s356 = scalar_select %p355, %s352, 1
        %s357 = smul.addr %s354, 2
        %s358 = sadd.s32 %s356, %s357
        %s359 = smul.addr %s358, 4
        %s360 = scalar_lea.vmem %s3, %s359
        %p361 = pneg %p129
        %p362 = pneg %p126
        %p363 = scmp.lt.s32.totalorder %s26, 10
        %s364 = scalar_select %p363, %s26, 10
        %s365 = smul.addr %s364, 4
        %s366 = smul.addr %s365, 8
        %s367 = scalar_lea.vmem %s4, %s366
        %p368 = pneg %p155
        %p369 = pneg %p152
        %p370 = pneg %p176
        %p371 = pneg %p173
        %p372 = pneg %p197
        %p373 = pneg %p194
        %p374 = pneg %p218
        %p375 = pneg %p215
        %p376 = pneg %p244
        %p377 = pneg %p241
        %s378 = smul.u32 2, %s25
        %p379 = scmp.lt.s32.totalorder %s378, 1
        %s380 = scalar_select %p379, %s378, 1
        %s381 = smul.addr %s380, 4
        %s382 = scalar_lea.vmem %s1, %s381
        %s383 = smul.u32 2, %s25
        %s384 = smul.u32 2, %s25
        %p385 = scmp.lt.s32.totalorder %s384, 1
        %s386 = scalar_select %p385, %s384, 1
        %s387 = smul.addr %s386, 4
        %s388 = scalar_lea.vmem %s2, %s387
        %s389 = smul.u32 2, %s25
        %s390 = smul.u32 2, %s25
        %p391 = scmp.lt.s32.totalorder %s26, 10
        %s392 = scalar_select %p391, %s26, 10
        %p393 = scmp.lt.s32.totalorder %s390, 1
        %s394 = scalar_select %p393, %s390, 1
        %s395 = smul.addr %s392, 2
        %s396 = sadd.s32 %s394, %s395
        %s397 = smul.addr %s396, 4
        %s398 = scalar_lea.vmem %s3, %s397
        %s399 = smul.u32 2, %s25
        %p400 = scmp.lt.s32.totalorder %s26, 10
        %s401 = scalar_select %p400, %s26, 10
        %s402 = smul.addr %s401, 4
        %s403 = smul.addr %s402, 8
        %s404 = scalar_lea.vmem %s4, %s403
        %s405 = smul.u32 2, %s25
        %p406 = scmp.eq.s32.totalorder %s26, 0
        // Predicated region
        $region57: #{_ddim_sample.1} parent=51 // pred_check
          %p407 = pneg %p406
        $region58: #{_ddim_sample.1} parent=51 // pred_check_branch
          %409 = sbr.rel (%p407) target = $region60
        $region59: #{_ddim_sample.1} parent=51 // pred_region
          %v410 = vld [vmem:[%s382] sm:$0x77]
          %411 = vst [vmem:[#allocation6] sm:$0x77] %v410
          %v412 = vld [vmem:[%s6] sm:$0xff]
          %v413 = vld [vmem:[%s6 + $0x8] sm:$0xff]
          %v414 = vld [vmem:[%s6 + $0x10] sm:$0xff]
          %v415 = vld [vmem:[%s6 + $0x18] sm:$0xff]
          %v416 = vld [vmem:[%s388] sm:$0xff]
          %418 = vst [vmem:[#allocation1] ss:$2 sm:$0xff] %v416
          %v419 = vld.sshfl [vmem:[#allocation1] sm:$0xff pattern:$0x75316420]
          %v420 = vld.sshfl [vmem:[#allocation1 + $0x8] sm:$0xff pattern:$0x75316420]
          %vm421 = vcmask 31744
          %v423 = vsel %vm421, %v412, 0
          %v426 = vsel %vm421, %v413, 0
          %v429 = vsel %vm421, %v414, 0
          %v432 = vsel %vm421, %v415, 0
          %vm434 = vcmask 1043456
          %v435 = vsel %vm434, %v419, 0
          %v437 = vsel %vm434, %v420, 0
          %439 = vmatpush.msra.mxu0 0.0
          %440 = vmatpush.msra.mxu0 0.0
          %441 = vmatpush.msra.mxu0 0.0
          %442 = vmatpush.msra.mxu0 0.0
          %443 = vmatpush.msra.mxu0 0.0
          %444 = vmatpush.msra.mxu0 0.0
          %445 = vmatpush.msra.mxu0 0.0
          %446 = vmatpush.msra.mxu0 0.0
          %447 = vmatpush.msra.mxu0 0.0
          %448 = vmatpush.msra.mxu0 0.0
          %449 = vmatpush.msra.mxu0 0.0
          %450 = vmatpush.msra.mxu0 0.0
          %451 = vmatpush.msra.mxu0 0.0
          %452 = vmatpush.msra.mxu0 0.0
          %453 = vmatpush.msra.mxu0 0.0
          %454 = vmatpush.msra.mxu0 %v435
          %455 = vmatmul.f32.gmra.mxu0 %v423
          %v456 = vpop.f32.mrf.mxu0
          %v457 = vadd.f32 0.0, %v456
          %458 = vmatmul.f32.gmra.mxu0 %v426
          %v459 = vpop.f32.mrf.mxu0
          %v460 = vadd.f32 0.0, %v459
          %461 = vmatmul.f32.gmra.mxu0 %v429
          %v462 = vpop.f32.mrf.mxu0
          %v463 = vadd.f32 0.0, %v462
          %464 = vmatmul.f32.gmra.mxu0 %v432
          %v465 = vpop.f32.mrf.mxu0
          %v466 = vadd.f32 0.0, %v465
          %467 = vdwg.mxu0
          %468 = vmatpush.msra.mxu0 0.0
          %469 = vmatpush.msra.mxu0 0.0
          %470 = vmatpush.msra.mxu0 0.0
          %471 = vmatpush.msra.mxu0 0.0
          %472 = vmatpush.msra.mxu0 0.0
          %473 = vmatpush.msra.mxu0 0.0
          %474 = vmatpush.msra.mxu0 0.0
          %475 = vmatpush.msra.mxu0 0.0
          %476 = vmatpush.msra.mxu0 0.0
          %477 = vmatpush.msra.mxu0 0.0
          %478 = vmatpush.msra.mxu0 0.0
          %479 = vmatpush.msra.mxu0 0.0
          %480 = vmatpush.msra.mxu0 0.0
          %481 = vmatpush.msra.mxu0 0.0
          %482 = vmatpush.msra.mxu0 0.0
          %483 = vmatpush.msra.mxu0 %v437
          %484 = vmatmul.f32.gmra.mxu0 %v423
          %v485 = vpop.f32.mrf.mxu0
          %v486 = vadd.f32 0.0, %v485
          %487 = vmatmul.f32.gmra.mxu0 %v426
          %v488 = vpop.f32.mrf.mxu0
          %v489 = vadd.f32 0.0, %v488
          %490 = vmatmul.f32.gmra.mxu0 %v429
          %v491 = vpop.f32.mrf.mxu0
          %v492 = vadd.f32 0.0, %v491
          %493 = vmatmul.f32.gmra.mxu0 %v432
          %v494 = vpop.f32.mrf.mxu0
          %v495 = vadd.f32 0.0, %v494
          %496 = vdwg.mxu0
          %497 = vst [vmem:[#allocation2] sm:$0xff] %v457
          %498 = vst [vmem:[#allocation2 + $0x8] sm:$0xff] %v486
          %499 = vst [vmem:[#allocation2 + $0x10] sm:$0xff] %v460
          %500 = vst [vmem:[#allocation2 + $0x18] sm:$0xff] %v489
          %501 = vst [vmem:[#allocation2 + $0x20] sm:$0xff] %v463
          %502 = vst [vmem:[#allocation2 + $0x28] sm:$0xff] %v492
          %503 = vst [vmem:[#allocation2 + $0x30] sm:$0xff] %v466
          %504 = vst [vmem:[#allocation2 + $0x38] sm:$0xff] %v495
        $region60: #{_ddim_sample.1} parent=51 // pred_fallthru
          _
        %v505 = vld [vmem:[#allocation6] sm:$0x77]
        %v506 = vld [vmem:[%s5] sm:$0xff]
        %v507 = vld [vmem:[%s5 + $0x8] sm:$0xff]
        %v508 = vld [vmem:[%s5 + $0x10] sm:$0xff]
        %v509 = vld [vmem:[%s5 + $0x18] sm:$0xff]
        %v510 = vld [vmem:[#allocation2] sm:$0xff]
        %v511 = vld [vmem:[#allocation2 + $0x8] sm:$0xff]
        %v512 = vld [vmem:[#allocation2 + $0x10] sm:$0xff]
        %v513 = vld [vmem:[#allocation2 + $0x18] sm:$0xff]
        %v514 = vld [vmem:[#allocation2 + $0x20] sm:$0xff]
        %v515 = vld [vmem:[#allocation2 + $0x28] sm:$0xff]
        %v516 = vld [vmem:[#allocation2 + $0x30] sm:$0xff]
        %v517 = vld [vmem:[#allocation2 + $0x38] sm:$0xff]
        %519 = vst [vmem:[#allocation1] ss:$2 sm:$0xff] %v505
        %v520 = vld.sshfl [vmem:[#allocation1] sm:$0xff pattern:$0x75316420]
        %v521 = vld.sshfl [vmem:[#allocation1 + $0x8] sm:$0xff pattern:$0x75316420]
        %vm522 = vcmask 23552
        %v524 = vsel %vm522, %v506, 0
        %v527 = vsel %vm522, %v507, 0
        %v530 = vsel %vm522, %v508, 0
        %v533 = vsel %vm522, %v509, 0
        %vm535 = vcmask 1042432
        %v536 = vsel %vm535, %v520, 0
        %v538 = vsel %vm535, %v521, 0
        %540 = vmatpush.msra.mxu0 0.0
        %541 = vmatpush.msra.mxu0 0.0
        %542 = vmatpush.msra.mxu0 0.0
        %543 = vmatpush.msra.mxu0 0.0
        %544 = vmatpush.msra.mxu0 0.0
        %545 = vmatpush.msra.mxu0 0.0
        %546 = vmatpush.msra.mxu0 0.0
        %547 = vmatpush.msra.mxu0 0.0
        %548 = vmatpush.msra.mxu0 0.0
        %549 = vmatpush.msra.mxu0 0.0
        %550 = vmatpush.msra.mxu0 0.0
        %551 = vmatpush.msra.mxu0 0.0
        %552 = vmatpush.msra.mxu0 0.0
        %553 = vmatpush.msra.mxu0 0.0
        %554 = vmatpush.msra.mxu0 0.0
        %555 = vmatpush.msra.mxu0 %v536
        %556 = vmatmul.f32.gmra.mxu0 %v524
        %v557 = vpop.f32.mrf.mxu0
        %v558 = vadd.f32 %v510, %v557
        %559 = vmatmul.f32.gmra.mxu0 %v527
        %v560 = vpop.f32.mrf.mxu0
        %v561 = vadd.f32 %v512, %v560
        %562 = vmatmul.f32.gmra.mxu0 %v530
        %v563 = vpop.f32.mrf.mxu0
        %v564 = vadd.f32 %v514, %v563
        %565 = vmatmul.f32.gmra.mxu0 %v533
        %v566 = vpop.f32.mrf.mxu0
        %v567 = vadd.f32 %v516, %v566
        %568 = vdwg.mxu0
        %569 = vmatpush.msra.mxu0 0.0
        %570 = vmatpush.msra.mxu0 0.0
        %571 = vmatpush.msra.mxu0 0.0
        %572 = vmatpush.msra.mxu0 0.0
        %573 = vmatpush.msra.mxu0 0.0
        %574 = vmatpush.msra.mxu0 0.0
        %575 = vmatpush.msra.mxu0 0.0
        %576 = vmatpush.msra.mxu0 0.0
        %577 = vmatpush.msra.mxu0 0.0
        %578 = vmatpush.msra.mxu0 0.0
        %579 = vmatpush.msra.mxu0 0.0
        %580 = vmatpush.msra.mxu0 0.0
        %581 = vmatpush.msra.mxu0 0.0
        %582 = vmatpush.msra.mxu0 0.0
        %583 = vmatpush.msra.mxu0 0.0
        %584 = vmatpush.msra.mxu0 %v538
        %585 = vmatmul.f32.gmra.mxu0 %v524
        %v586 = vpop.f32.mrf.mxu0
        %v587 = vadd.f32 %v511, %v586
        %588 = vmatmul.f32.gmra.mxu0 %v527
        %v589 = vpop.f32.mrf.mxu0
        %v590 = vadd.f32 %v513, %v589
        %591 = vmatmul.f32.gmra.mxu0 %v530
        %v592 = vpop.f32.mrf.mxu0
        %v593 = vadd.f32 %v515, %v592
        %594 = vmatmul.f32.gmra.mxu0 %v533
        %v595 = vpop.f32.mrf.mxu0
        %v596 = vadd.f32 %v517, %v595
        %597 = vdwg.mxu0
        %v598 = vld [vmem:[%s404] sm:$0xff]
        %v599 = vld [vmem:[%s404 + $0x8] sm:$0xff]
        %v600 = vld [vmem:[%s404 + $0x10] sm:$0xff]
        %v601 = vld [vmem:[%s404 + $0x18] sm:$0xff]
        %603 = vset.pattern.permute.xlu0 0
        %604 = vperm.xlu0 %603, %v598
        %v605 = vpop.permute.xlu0 %604
        %608 = vset.pattern.permute.xlu0 0
        %609 = vperm.xlu0 %608, %v599
        %v610 = vpop.permute.xlu0 %609
        %613 = vset.pattern.permute.xlu0 0
        %614 = vperm.xlu0 %613, %v600
        %v615 = vpop.permute.xlu0 %614
        %618 = vset.pattern.permute.xlu0 0
        %619 = vperm.xlu0 %618, %v601
        %v620 = vpop.permute.xlu0 %619
        %v622 = vadd.f32 %v558, %v605
        %v623 = vadd.f32 %v587, %v605
        %v624 = vadd.f32 %v561, %v610
        %v625 = vadd.f32 %v590, %v610
        %v626 = vadd.f32 %v564, %v615
        %v627 = vadd.f32 %v593, %v615
        %v628 = vadd.f32 %v567, %v620
        %v629 = vadd.f32 %v596, %v620
        %v630 = vtanh.pop %v622
        %v631 = vtanh.pop %v623
        %v632 = vtanh.pop %v624
        %v633 = vtanh.pop %v625
        %v634 = vtanh.pop %v626
        %v635 = vtanh.pop %v627
        %v636 = vtanh.pop %v628
        %v637 = vtanh.pop %v629
        %v638 = vld [vmem:[%s7] sm:$0x7]
        %vm639 = vcmask 261120
        %v641 = vsel %vm639, %v638, 0
        %643 = vmatpush.msra.mxu0 0.0
        %644 = vmatpush.msra.mxu0 0.0
        %645 = vmatpush.msra.mxu0 0.0
        %646 = vmatpush.msra.mxu0 0.0
        %647 = vmatpush.msra.mxu0 0.0
        %648 = vmatpush.msra.mxu0 0.0
        %649 = vmatpush.msra.mxu0 0.0
        %650 = vmatpush.msra.mxu0 0.0
        %651 = vmatpush.msra.mxu0 0.0
        %652 = vmatpush.msra.mxu0 0.0
        %653 = vmatpush.msra.mxu0 0.0
        %654 = vmatpush.msra.mxu0 0.0
        %655 = vmatpush.msra.mxu0 %v636
        %656 = vmatpush.msra.mxu0 %v634
        %657 = vmatpush.msra.mxu0 %v632
        %658 = vmatpush.msra.mxu0 %v630
        %659 = vmatmul.f32.gmra.mxu0 %v641
        %v660 = vpop.f32.mrf.mxu0
        %v661 = vadd.f32 0.0, %v660
        %662 = vdwg.mxu0
        %663 = vmatpush.msra.mxu0 0.0
        %664 = vmatpush.msra.mxu0 0.0
        %665 = vmatpush.msra.mxu0 0.0
        %666 = vmatpush.msra.mxu0 0.0
        %667 = vmatpush.msra.mxu0 0.0
        %668 = vmatpush.msra.mxu0 0.0
        %669 = vmatpush.msra.mxu0 0.0
        %670 = vmatpush.msra.mxu0 0.0
        %671 = vmatpush.msra.mxu0 0.0
        %672 = vmatpush.msra.mxu0 0.0
        %673 = vmatpush.msra.mxu0 0.0
        %674 = vmatpush.msra.mxu0 0.0
        %675 = vmatpush.msra.mxu0 %v637
        %676 = vmatpush.msra.mxu0 %v635
        %677 = vmatpush.msra.mxu0 %v633
        %678 = vmatpush.msra.mxu0 %v631
        %679 = vmatmul.f32.gmra.mxu0 %v641
        %v680 = vpop.f32.mrf.mxu0
        %v681 = vadd.f32 0.0, %v680
        %682 = vdwg.mxu0
        %s683 = smul.u32 %s26, 128
        %s684 = sld [smem:[#allocation3 + %s683]]
        %s685 = sadd.s32 %s683, 1
        %s686 = sld [smem:[#allocation3 + %s685]]
        %s687 = sadd.s32 %s683, 2
        %s688 = sld [smem:[#allocation3 + %s687]]
        %v689 = vstv %s684
        %v690 = vmul.f32 %v689, %v505
        %v691 = vstv %s686
        %v692 = vmul.f32 %v691, %v661
        %v693 = vmul.f32 %v691, %v681
        %v696 = vrot.slane %v693, 4
        %vm697 = vcmask 1043456
        %v698 = vsel %vm697, %v692, %v696
        %v700 = vadd.f32 %v690, %v698
        %v701 = vld [vmem:[%s398] sm:$0x77]
        %v702 = vstv %s688
        %v703 = vmul.f32 %v702, %v701
        %v704 = vadd.f32 %v700, %v703
        %705 = vst [vmem:[#allocation6] sm:$0x77] %v704
        // Predicated region
        $region61: #{_ddim_sample.1} parent=51 // pred_check
          %p706 = pneg %p241
        $region62: #{_ddim_sample.1} parent=51 // pred_check_branch
          %708 = sbr.rel (%p706) target = $region64
        $region63: #{_ddim_sample.1} parent=51 // pred_region
          %s709 = smul.u32 2, %s25
          %711 = vsyncadd [#allocation4], 0
          %s712 = smul.addr %s709, 4
          %s713 = scalar_lea.hbm %s8, %s712
          %s715 = sshll.u32 [#allocation6], 4
          %s716 = int_to_ptr.vmem [resolvable:$true] %s715
          %s717 = sshll.u32 %s713, 4
          %s718 = int_to_ptr.hbm [resolvable:$true] %s717
          %720 = dma.vmem_to_hbm [thread:$0]  %s716, 128, %s718, [#allocation4]
        $region64: #{_ddim_sample.1} parent=51 // pred_fallthru
          _
        // Predicated region
        $region65: #{_ddim_sample.1} parent=51 // pred_check
          %p721 = pneg %p241
        $region66: #{_ddim_sample.1} parent=51 // pred_check_branch
          %723 = sbr.rel (%p721) target = $region68
        $region67: #{_ddim_sample.1} parent=51 // pred_region
          %725 = dma.done [#allocation4], 128
        $region68: #{_ddim_sample.1} parent=51 // pred_fallthru
          _
      $region52: #{_ddim_sample.1} parent=5 // pred_fallthru
        _
      %p726 = scmp.le.s32.totalorder 2, %s16
      // Predicated region
      $region69: #{_ddim_sample.1} parent=5 // pred_check
        %p727 = pneg %p726
      $region70: #{_ddim_sample.1} parent=5 // pred_check_branch
        %729 = sbr.rel (%p727) target = $region72
      $region71: #{_ddim_sample.1} parent=5 // pred_region
        %s730 = ssub.s32 %s16, 2
      $region72: #{_ddim_sample.1} parent=5 // pred_fallthru
        _
    $region6: #{_ddim_sample.1} parent=1 // loop_footer
      %s20 = sadd.s32 1, %s16
    $region7: #{_ddim_sample.1} parent=1 // loop_footer_branch
      %15 = sbr.rel target = $region3
    $region8: #{_ddim_sample.1} parent=1 // loop_exit
      _
    %731 = vsyncpa [#allocation4], 1
    %s732 = scalar_lea.sflag [#allocation4], 1
    %733 = vsyncpa %s732, 1
    %734 = vsyncpa [#allocation5], 1
    %s735 = scalar_lea.sflag [#allocation5], 1
    %736 = vsyncpa %s735, 1

</llo_original>
